<compile_context>
chip_gen: v7x
topology: tpu7x:2x2x1
jax: 0.10.0
libtpu: 0.0.40
codegen_flags: <defaults>
</compile_context>

<pallas_src>
import functools

import jax
import jax.numpy as jnp
from jax.experimental import pallas as pl
from jax.experimental.pallas import tpu as pltpu


def _round_up(a, b):
    return -(-a // b) * b


def _prompt_kernel(x_ref, p_ref, m_ref, o_ref):
    """o = where(mask, patch, x) on the (bt, C, Rp, Wb) top-left corner strip.

    x_ref: (bt, C, Rp, Wb) top-left corner strip of each image
    p_ref: (1,  C, Rp, Wb) patch zero-padded to the strip (constant block)
    m_ref: (1,  C, Rp, Wb) 1.0 inside the P x P patch region, else 0.0
    o_ref: (bt, C, Rp, Wb) output strip (aliased with x's buffer)
    """
    # Single full-block select + full-block lane-dense store; no iota/div work.
    o_ref[...] = jnp.where(m_ref[...] != 0.0, p_ref[...], x_ref[...])


def _num_tensorcores():
    try:
        return max(1, int(getattr(jax.devices()[0], "num_cores", 1)))
    except Exception:
        return 1


def _pick_block_batch(batch, bytes_per_image, num_cores,
                      target_bytes=4 << 20, min_step_bytes=1 << 20):
    """Images per grid step.

    Single-TC chips (v5e/v6e): take the largest divisor of `batch` whose
    per-step HBM traffic stays under `target_bytes` (bigger steps amortize the
    ~0.35us per-step overhead; the grid is a serial loop there).
    Multi-TC chips (v7x): additionally try to make the number of grid steps a
    multiple of num_cores, but only if each step still moves >= min_step_bytes.
    """
    bt = max(1, min(batch, target_bytes // max(bytes_per_image, 1)))
    while batch % bt:
        bt -= 1
    if num_cores > 1 and (batch // bt) % num_cores != 0:
        for cand in range(bt, 0, -1):
            if (batch % cand == 0
                    and (batch // cand) % num_cores == 0
                    and cand * bytes_per_image >= min_step_bytes):
                bt = cand
                break
    return bt


@functools.partial(jax.jit, static_argnums=(2,), donate_argnums=(0,))
def fixed_patch_prompter(x, patch, prompt_size):
    """Apply the fixed-patch visual prompt.

    x:     (B, 3, H, W) float32 (donated: its buffer becomes the output)
    patch: (1, 3, P, P) float32 (the nn.Parameter)
    """
    B, C, H, W = x.shape
    P = prompt_size
    assert patch.shape == (1, C, P, P), "patch must be (1, C, P, P)"
    assert 0 < P <= H and P <= W, "prompt_size must fit inside the image"

    # Corner strip covering the patch:
    #   rows    -> multiple of the f32 sublane (8), or the full height
    #   columns -> multiple of the 128-lane vreg width, or the full width
    # Blocks therefore satisfy the (8, 128) rule and stores stay unmasked.
    Rp = min(_round_up(P, 8), H)
    Wb = min(_round_up(P, 128), W)
    assert P <= Rp and P <= Wb  # patch is never truncated by the block

    # Zero-pad the patch to the strip and precompute the constant select mask
    # (moves the iota / compare work out of the kernel; both are tiny and have
    # a constant block index so they are not re-DMA'd between grid steps).
    patch_pad = jnp.pad(patch, ((0, 0), (0, 0), (0, Rp - P), (0, Wb - P)))
    row = jax.lax.broadcasted_iota(jnp.int32, (1, C, Rp, Wb), 2)
    col = jax.lax.broadcasted_iota(jnp.int32, (1, C, Rp, Wb), 3)
    mask = ((row < P) & (col < P)).astype(x.dtype)

    itemsize = x.dtype.itemsize
    bytes_per_image = 2 * C * Rp * Wb * itemsize  # strip read + strip write
    num_cores = _num_tensorcores()
    bt = _pick_block_batch(B, bytes_per_image, num_cores)
    grid = (B // bt,)

    # VMEM budget: double-buffered x block + double-buffered out block
    # + patch/mask constants, plus headroom.
    block_bytes = bt * C * Rp * Wb * itemsize
    const_bytes = 2 * C * Rp * Wb * itemsize
    vmem_need = 4 * block_bytes + 2 * const_bytes + (1 << 20)
    vmem_limit = int(min(max(vmem_need, 4 << 20), 48 << 20))

    out = pl.pallas_call(
        _prompt_kernel,
        out_shape=jax.ShapeDtypeStruct((B, C, H, W), x.dtype),
        grid_spec=pltpu.PrefetchScalarGridSpec(
            num_scalar_prefetch=0,
            grid=grid,
            in_specs=[
                # Only the top-left (Rp x Wb) corner of each image is read.
                pl.BlockSpec((bt, C, Rp, Wb), lambda b: (b, 0, 0, 0)),
                # Constant tiny patch strip (full-extent block, fixed index).
                pl.BlockSpec((1, C, Rp, Wb), lambda b: (0, 0, 0, 0)),
                # Constant 0/1 mask (full-extent block, fixed index).
                pl.BlockSpec((1, C, Rp, Wb), lambda b: (0, 0, 0, 0)),
            ],
            out_specs=pl.BlockSpec((bt, C, Rp, Wb), lambda b: (b, 0, 0, 0)),
        ),
        # Output buffer *is* x's buffer: every element outside the corner strip
        # already holds the correct value, so only the strip moves HBM<->VMEM.
        input_output_aliases={0: 0},
        compiler_params=pltpu.CompilerParams(
            dimension_semantics=("parallel",),
            vmem_limit_bytes=vmem_limit,
        ),
    )(x, patch_pad, mask)

    return out


if __name__ == "__main__":
    # args.image_size = 16, args.prompt_size = 4 (small, consistent shapes)
    image_size = 16
    prompt_size = 4
    batch = 2
    channels = 3  # the module hard-codes 3 channels

    key = jax.random.PRNGKey(0)
    k_x, k_p = jax.random.split(key)

    x = jax.random.normal(k_x, (batch, channels, image_size, image_size),
                          dtype=jnp.float32)
    # Deterministic stand-in for the torch.randn((1, 3, P, P)) parameter init.
    patch = jax.random.normal(k_p, (1, channels, prompt_size, prompt_size),
                              dtype=jnp.float32)

    # Reference computed (and materialized) BEFORE x is donated to the kernel.
    ref = x.at[:, :, :prompt_size, :prompt_size].set(
        jnp.broadcast_to(patch, (batch, channels, prompt_size, prompt_size))
    )
    ref = jax.block_until_ready(ref)

    out = fixed_patch_prompter(x, patch, prompt_size)
    out = jax.block_until_ready(out)

    assert out.shape == (batch, channels, image_size, image_size)
    assert jnp.allclose(out, ref), "mismatch vs reference"

    print("KERNEL_OK")
</pallas_src>

<mosaic_0001>
module attributes {stable_mosaic.version = 11 : i64} {
  func.func @_prompt_kernel(%arg0: i32, %arg1: memref<2x3x8x16xf32, #tpu.memory_space<vmem>>, %arg2: memref<1x3x8x16xf32, #tpu.memory_space<vmem>>, %arg3: memref<1x3x8x16xf32, #tpu.memory_space<vmem>>, %arg4: memref<2x3x8x16xf32, #tpu.memory_space<vmem>>) attributes {dimension_semantics = [#tpu.dimension_semantics<parallel>], iteration_bounds = array<i64: 1>, scalar_prefetch = 0 : i64, scratch_operands = 0 : i64, tpu.core_type = #tpu.core_type<tc>, window_params = [{transform_indices = @transform_0, window_bounds = array<i64: 2, 3, 8, 16>}, {pipeline_mode = #tpu.pipeline_mode<synchronous>, transform_indices = @transform_1, window_bounds = array<i64: 1, 3, 8, 16>}, {pipeline_mode = #tpu.pipeline_mode<synchronous>, transform_indices = @transform_2, window_bounds = array<i64: 1, 3, 8, 16>}, {transform_indices = @transform_3, window_bounds = array<i64: 2, 3, 8, 16>}]} {
    %c0 = arith.constant 0 : index
    %c0_0 = arith.constant 0 : index
    %c0_1 = arith.constant 0 : index
    %c0_2 = arith.constant 0 : index
    %0 = vector.load %arg3[%c0, %c0_0, %c0_1, %c0_2] : memref<1x3x8x16xf32, #tpu.memory_space<vmem>>, vector<1x3x8x16xf32>
    %cst = arith.constant 0.000000e+00 : f32
    %1 = vector.broadcast %cst : f32 to vector<1x3x8x16xf32>
    %2 = arith.cmpf one, %0, %1 : vector<1x3x8x16xf32>
    %c0_3 = arith.constant 0 : index
    %c0_4 = arith.constant 0 : index
    %c0_5 = arith.constant 0 : index
    %c0_6 = arith.constant 0 : index
    %3 = vector.load %arg2[%c0_3, %c0_4, %c0_5, %c0_6] : memref<1x3x8x16xf32, #tpu.memory_space<vmem>>, vector<1x3x8x16xf32>
    %c0_7 = arith.constant 0 : index
    %c0_8 = arith.constant 0 : index
    %c0_9 = arith.constant 0 : index
    %c0_10 = arith.constant 0 : index
    %4 = vector.load %arg1[%c0_7, %c0_8, %c0_9, %c0_10] : memref<2x3x8x16xf32, #tpu.memory_space<vmem>>, vector<2x3x8x16xf32>
    %5 = vector.shape_cast %2 : vector<1x3x8x16xi1> to vector<1x3x8x16xi1>
    %6 = vector.broadcast %5 : vector<1x3x8x16xi1> to vector<2x3x8x16xi1>
    %7 = vector.shape_cast %3 : vector<1x3x8x16xf32> to vector<1x3x8x16xf32>
    %8 = vector.broadcast %7 : vector<1x3x8x16xf32> to vector<2x3x8x16xf32>
    %9 = arith.select %6, %8, %4 : vector<2x3x8x16xi1>, vector<2x3x8x16xf32>
    %c0_11 = arith.constant 0 : index
    %c0_12 = arith.constant 0 : index
    %c0_13 = arith.constant 0 : index
    %c0_14 = arith.constant 0 : index
    %10 = vector.load %arg4[%c0_11, %c0_12, %c0_13, %c0_14] : memref<2x3x8x16xf32, #tpu.memory_space<vmem>>, vector<2x3x8x16xf32>
    tpu.vector_store %arg4[%c0_11, %c0_12, %c0_13, %c0_14], %9 {strides = array<i32>} : memref<2x3x8x16xf32, #tpu.memory_space<vmem>>, vector<2x3x8x16xf32>,
    return
  }
  func.func @transform_0(%arg0: i32) -> (i32, i32, i32, i32) {
    %c0_i32 = arith.constant 0 : i32
    %c0_i32_0 = arith.constant 0 : i32
    %c0_i32_1 = arith.constant 0 : i32
    %c0_i32_2 = arith.constant 0 : i32
    return %arg0, %c0_i32, %c0_i32_0, %c0_i32_1 : i32, i32, i32, i32
  }
  func.func @transform_1(%arg0: i32) -> (i32, i32, i32, i32) {
    %c0_i32 = arith.constant 0 : i32
    %c0_i32_0 = arith.constant 0 : i32
    %c0_i32_1 = arith.constant 0 : i32
    %c0_i32_2 = arith.constant 0 : i32
    %c0_i32_3 = arith.constant 0 : i32
    return %c0_i32, %c0_i32_0, %c0_i32_1, %c0_i32_2 : i32, i32, i32, i32
  }
  func.func @transform_2(%arg0: i32) -> (i32, i32, i32, i32) {
    %c0_i32 = arith.constant 0 : i32
    %c0_i32_0 = arith.constant 0 : i32
    %c0_i32_1 = arith.constant 0 : i32
    %c0_i32_2 = arith.constant 0 : i32
    %c0_i32_3 = arith.constant 0 : i32
    return %c0_i32, %c0_i32_0, %c0_i32_1, %c0_i32_2 : i32, i32, i32, i32
  }
  func.func @transform_3(%arg0: i32) -> (i32, i32, i32, i32) {
    %c0_i32 = arith.constant 0 : i32
    %c0_i32_0 = arith.constant 0 : i32
    %c0_i32_1 = arith.constant 0 : i32
    %c0_i32_2 = arith.constant 0 : i32
    return %arg0, %c0_i32, %c0_i32_0, %c0_i32_1 : i32, i32, i32, i32
  }
}

</mosaic_0001>

<llo_original>
// kernel: fixed_patch_prompter.1
$region0: #{fixed_patch_prompter.1}
  #allocation0 [shape = 'u32[]', space=smem, size = 0x4, offset = 0x4, fixed_abs, tag = 'smem constant byte address 0x4 - core index']
  #allocation1 [shape = 'u32[144,128]{1,0:T(1,128)}', space=vmem, size = 0x12000, scoped, tag = 'internal scratch']
  %s0 = inlined_call_operand.hbm [shape: f32[2,3,16,16], index: 0, kind: input, shape index: {}, may-alias: {0,3}]
  %s1 = inlined_call_operand.vmem [shape: f32[1,3,8,16], index: 1, kind: input, shape index: {}]
  %s2 = inlined_call_operand.vmem [shape: f32[1,3,8,16], index: 2, kind: input, shape index: {}]
  %s3 = inlined_call_operand.hbm [shape: f32[2,3,16,16], index: 3, kind: output, shape index: {}, may-alias: {0,3}]
  %s4 = sld [smem:[#allocation0]]
  $region26: #{fixed_patch_prompter.1} parent=0
    _
  %s6 = ssub.s32 1, %s4
  %s7 = scalar_select 0, %s6, %s4
  $region1: #{fixed_patch_prompter.1} parent=0
    #allocation2 [shape = 'u8[24576]{0}', space=vmem, size = 0x6000, scoped, tag = 'input window, operand 0, single buffered']
    #allocation3 [shape = 's32[1]{0}', space=sflag, size = 0x4, scoped, tag = 'scoped memory for fixed_patch_prompter.1']
    #allocation4 [shape = 's32[1]{0}', space=sflag, size = 0x4, scoped, tag = 'scoped memory for fixed_patch_prompter.1']
    #allocation5 [shape = 'u8[24576]{0}', space=vmem, size = 0x6000, scoped, tag = 'output window, operand 0, single buffered']
    %8 = vsyncpa [#allocation3], 0
    %9 = vsyncpa [#allocation4], 0
    // Predicated region
    $region2: #{fixed_patch_prompter.1} parent=1 // pred_check
      _
    $region3: #{fixed_patch_prompter.1} parent=1 // pred_check_branch
      %11 = sbr.rel (0) target = $region5
    $region4: #{fixed_patch_prompter.1} parent=1 // pred_region
      %s13 = ssub.s32 768, 768
      %14 = vsyncadd [#allocation3], %s13
      %s15 = sshll.u32 [#allocation2], 4
      %s16 = int_to_ptr.vmem [resolvable:$true] %s15
      %21 = dma.hbm_to_vmem [thread:$0]  %s0, 768, %s16, [#allocation3], 256, 128, 8
    $region5: #{fixed_patch_prompter.1} parent=1 // pred_fallthru
      _
    // Predicated region
    $region6: #{fixed_patch_prompter.1} parent=1 // pred_check
      _
    $region7: #{fixed_patch_prompter.1} parent=1 // pred_check_branch
      %23 = sbr.rel (0) target = $region9
    $region8: #{fixed_patch_prompter.1} parent=1 // pred_region
      _
    $region9: #{fixed_patch_prompter.1} parent=1 // pred_fallthru
      _
    // Predicated region
    $region10: #{fixed_patch_prompter.1} parent=1 // pred_check
      _
    $region11: #{fixed_patch_prompter.1} parent=1 // pred_check_branch
      %25 = sbr.rel (0) target = $region13
    $region12: #{fixed_patch_prompter.1} parent=1 // pred_region
      _
    $region13: #{fixed_patch_prompter.1} parent=1 // pred_fallthru
      _
    // Predicated region
    $region14: #{fixed_patch_prompter.1} parent=1 // pred_check
      _
    $region15: #{fixed_patch_prompter.1} parent=1 // pred_check_branch
      %27 = sbr.rel (0) target = $region17
    $region16: #{fixed_patch_prompter.1} parent=1 // pred_region
      %28 = dma.done [#allocation3], 768
    $region17: #{fixed_patch_prompter.1} parent=1 // pred_fallthru
      _
    %v29 = vld [vmem:[%s2] sm:$0xff]
    %v30 = vld [vmem:[%s2 + $0x8] sm:$0xff]
    %v31 = vld [vmem:[%s2 + $0x10] sm:$0xff]
    %vm32 = vcmp.ne.f32.partialorder %v29, 0.0
    %vm33 = vcmp.ne.f32.partialorder %v30, 0.0
    %vm34 = vcmp.ne.f32.partialorder %v31, 0.0
    %v35 = vld [vmem:[%s1] sm:$0xff]
    %v36 = vld [vmem:[%s1 + $0x8] sm:$0xff]
    %v37 = vld [vmem:[%s1 + $0x10] sm:$0xff]
    %v38 = vld [vmem:[#allocation2] sm:$0xff]
    %v39 = vld [vmem:[#allocation2 + $0x8] sm:$0xff]
    %v40 = vld [vmem:[#allocation2 + $0x10] sm:$0xff]
    %v41 = vld [vmem:[#allocation2 + $0x18] sm:$0xff]
    %v42 = vld [vmem:[#allocation2 + $0x20] sm:$0xff]
    %v43 = vld [vmem:[#allocation2 + $0x28] sm:$0xff]
    %v44 = vsel %vm32, 1, 0
    %v45 = vsel %vm33, 1, 0
    %v46 = vsel %vm34, 1, 0
    %vm47 = vcmp.eq.s32.totalorder %v44, 1
    %vm48 = vcmp.eq.s32.totalorder %v45, 1
    %vm49 = vcmp.eq.s32.totalorder %v46, 1
    %v50 = vsel %vm47, %v35, %v38
    %v51 = vsel %vm48, %v36, %v39
    %v52 = vsel %vm49, %v37, %v40
    %v53 = vsel %vm47, %v35, %v41
    %v54 = vsel %vm48, %v36, %v42
    %v55 = vsel %vm49, %v37, %v43
    %vm56 = vcmask 130048
    %57 = vst.msk [vmem:[#allocation5] sm:$0xff] %vm56, %v50
    %58 = vst.msk [vmem:[#allocation5 + $0x8] sm:$0xff] %vm56, %v51
    %59 = vst.msk [vmem:[#allocation5 + $0x10] sm:$0xff] %vm56, %v52
    %60 = vst.msk [vmem:[#allocation5 + $0x18] sm:$0xff] %vm56, %v53
    %61 = vst.msk [vmem:[#allocation5 + $0x20] sm:$0xff] %vm56, %v54
    %62 = vst.msk [vmem:[#allocation5 + $0x28] sm:$0xff] %vm56, %v55
    // Predicated region
    $region18: #{fixed_patch_prompter.1} parent=1 // pred_check
      _
    $region19: #{fixed_patch_prompter.1} parent=1 // pred_check_branch
      %64 = sbr.rel (0) target = $region21
    $region20: #{fixed_patch_prompter.1} parent=1 // pred_region
      %s66 = ssub.s32 768, 768
      %67 = vsyncadd [#allocation4], %s66
      %s68 = sshll.u32 [#allocation5], 4
      %s69 = int_to_ptr.vmem [resolvable:$true] %s68
      %74 = dma.vmem_to_hbm [thread:$0]  %s69, 768, %s3, [#allocation4], 128, 256, 8
    $region21: #{fixed_patch_prompter.1} parent=1 // pred_fallthru
      _
    // Predicated region
    $region22: #{fixed_patch_prompter.1} parent=1 // pred_check
      _
    $region23: #{fixed_patch_prompter.1} parent=1 // pred_check_branch
      %76 = sbr.rel (0) target = $region25
    $region24: #{fixed_patch_prompter.1} parent=1 // pred_region
      %77 = dma.done [#allocation4], 768
    $region25: #{fixed_patch_prompter.1} parent=1 // pred_fallthru
      _
    %78 = vsyncpa [#allocation3], 1
    %79 = vsyncpa [#allocation4], 1

</llo_original>
